<compile_context>
chip_gen: v6e
topology: v6e:2x2x1
jax: 0.10.0
libtpu: 0.0.40
codegen_flags: <defaults>
</compile_context>

<pallas_src>
import math
import jax
import jax.numpy as jnp
from jax.experimental import pallas as pl
from jax.experimental.pallas import tpu as pltpu

ALPHA = 0.3
_INV_SQRT2 = 1.0 / math.sqrt(2.0)


# --------------------------------------------------------------------------
# Kernel body (unified: works for both the fused path (n_h == 1) and the
# hidden-dim-tiled path (n_h > 1)).
# --------------------------------------------------------------------------
def _kd_kernel(tgt_ref, src_ref, w1_ref, b1_ref, w2_ref, b2_ref, out_ref,
               acc_ref):
    h_idx = pl.program_id(1)

    @pl.when(h_idx == 0)
    def _init():
        acc_ref[...] = jnp.zeros_like(acc_ref)

    # Linear 1 slab: (tile_b, D) @ (D, tile_h) on the MXU, f32 accumulate.
    h = jnp.dot(src_ref[...], w1_ref[...], preferred_element_type=jnp.float32)
    h = h + b1_ref[...].astype(jnp.float32)            # (tile_b, tile_h) + (1, tile_h)

    # Exact GELU (matches nn.GELU(approximate='none')) in f32 on VPU/EUP.
    h = 0.5 * h * (1.0 + jax.lax.erf(h * jnp.float32(_INV_SQRT2)))

    # Linear 2 slab: accumulate partial (tile_b, D) contribution.  Cast the
    # activation back to the weight dtype so bf16 weights keep the MXU in
    # bf16 mode (no-op for f32 weights).
    acc_ref[...] += jnp.dot(h.astype(w2_ref.dtype), w2_ref[...],
                            preferred_element_type=jnp.float32)

    @pl.when(h_idx == pl.num_programs(1) - 1)
    def _finalize():
        t = acc_ref[...] + b2_ref[...].astype(jnp.float32)
        out = (1.0 - ALPHA) * tgt_ref[...].astype(jnp.float32) + ALPHA * t
        out_ref[...] = out.astype(out_ref.dtype)


# --------------------------------------------------------------------------
# Sizing helpers
# --------------------------------------------------------------------------
def _round_up(x: int, m: int) -> int:
    return ((x + m - 1) // m) * m


def _round_down(x: int, m: int) -> int:
    return (x // m) * m


def _vmem_capacity_bytes() -> int:
    """Generation-aware VMEM capacity (v5e/v6e: 128 MiB, v7x: 64 MiB)."""
    try:
        info = pltpu.get_tpu_info()
        for attr in ("vmem_capacity_bytes", "vmem_capacity", "vmem_bytes"):
            v = getattr(info, attr, None)
            if v:
                return int(v)
    except Exception:
        pass
    return 64 * 1024 * 1024  # conservative fallback (v7x-sized)


def _align_tile_b(t: int) -> int:
    """Round a row-tile down to the largest MXU-friendly alignment (prefer
    256 for v6e/v7x's 2x256x256 MXUs, fall back to 128/.../8)."""
    for a in (256, 128, 64, 32, 16, 8):
        if t >= a:
            return _round_down(t, a)
    return 8


def _pick_tile_h(D: int, w_itemsize: int, budget: int) -> int:
    """Full weight residency when it fits comfortably; otherwise slice the
    hidden dim into 128-aligned slabs that divide D exactly (no ragged
    contraction blocks)."""
    full_w_bytes = 2 * D * D * w_itemsize + 2 * D * w_itemsize
    if full_w_bytes <= 0.45 * budget or D % 128 != 0:
        return D
    # Double-buffered slabs: per step ~2*D*tile_h*w_itemsize, x2 buffers.
    max_h = int((0.45 * budget) // (4 * D * w_itemsize))
    max_h = min(max_h, D)
    for cand in range(_round_down(max_h, 128), 127, -128):
        if D % cand == 0:
            return cand
    return 128 if D % 128 == 0 else D


# --------------------------------------------------------------------------
# Wrapper
# --------------------------------------------------------------------------
def knowledge_distillation(target_features, source_features, w1, b1, w2, b2,
                           *, tile_b=None, tile_h=None, param_dtype=None):
    """target_features, source_features: (B, D); w1, w2: (D, D); b1, b2: (1, D).

    param_dtype: optionally cast weights/biases (e.g. jnp.bfloat16) for the
    HBM-bound regime.  Off by default to keep f32 parity with the reference.
    """
    B, D = target_features.shape
    assert source_features.shape == (B, D)
    assert w1.shape == (D, D) and w2.shape == (D, D)
    assert b1.shape == (1, D) and b2.shape == (1, D)
    # Note: D should ideally be a multiple of 128 for lane-dense stores; we
    # always use full-D blocks on the last dim so other D still lower legally.

    if param_dtype is not None:
        # Correctness note: bf16 weights imply a bf16 second-matmul input
        # (matches a bf16 PyTorch forward, not an f32 reference at 1e-5).
        w1 = w1.astype(param_dtype)
        b1 = b1.astype(param_dtype)
        w2 = w2.astype(param_dtype)
        b2 = b2.astype(param_dtype)

    act_itemsize = jnp.dtype(target_features.dtype).itemsize
    w_itemsize = jnp.dtype(w1.dtype).itemsize

    vmem_cap = _vmem_capacity_bytes()
    budget = int(0.80 * vmem_cap)          # leave headroom below physical VMEM

    # ---- hidden-dim tiling decision (weight VMEM residency) ----
    if tile_h is None:
        tile_h = _pick_tile_h(D, w_itemsize, budget)
    tile_h = min(tile_h, D)
    n_h = pl.cdiv(D, tile_h)
    if n_h > 1:
        assert D % tile_h == 0 and tile_h % 128 == 0, (
            "hidden tile must be a 128-multiple that divides D")
        # double-buffered weight/bias slabs + single-buffered b2
        w_bytes = 4 * D * tile_h * w_itemsize + 4 * tile_h * w_itemsize + 2 * D * w_itemsize
    else:
        # grid-invariant, single-buffered full weights
        w_bytes = 2 * D * D * w_itemsize + 2 * D * w_itemsize

    # ---- VMEM-aware batch tile (prefer large, 256-aligned tiles; ragged
    # last block via cdiv instead of tile_b = B fallback) ----
    # per-row bytes: double-buffered tgt/src/out streams + f32 h slab (x2 for
    # compiler temporaries) + f32 accumulator + f32 output temp.
    bytes_per_row = 2 * 3 * D * act_itemsize + 2 * tile_h * 4 + 2 * D * 4
    if tile_b is None:
        act_budget = max(budget - w_bytes, 4 * 1024 * 1024)
        cap_rows = max(8, int(act_budget // bytes_per_row))
        tile_b = min(1024, cap_rows, max(8, _round_up(B, 8)))
        tile_b = _align_tile_b(tile_b)
    tile_b = max(8, min(tile_b, _round_up(B, 8)))

    grid = (pl.cdiv(B, tile_b), n_h)

    # ---- VMEM limit: generation-clamped, sized to actual need + headroom ----
    need = w_bytes + tile_b * bytes_per_row
    vmem_limit = int(min(budget, max(16 * 1024 * 1024, int(1.5 * need))))

    cost = pl.CostEstimate(
        flops=4 * B * D * D,                    # two (B,D)@(D,D) matmuls
        transcendentals=B * D,                  # one erf per element
        bytes_accessed=(3 * B * D * act_itemsize        # target + source + out
                        + 2 * D * D * w_itemsize        # weights
                        + 2 * D * w_itemsize),          # biases
    )

    # ---- BlockSpecs ----
    def _weight_spec(shape, idx_map):
        if n_h == 1:
            # Grid-invariant -> fetch once, single-buffer (halves weight VMEM).
            return pl.BlockSpec(shape, idx_map, pipeline_mode=pl.Buffered(1))
        return pl.BlockSpec(shape, idx_map)     # slabs change per h step

    act_spec = pl.BlockSpec((tile_b, D), lambda i, h: (i, 0))
    in_specs = [
        act_spec,                                                  # target
        act_spec,                                                  # source
        _weight_spec((D, tile_h), lambda i, h: (0, h)),            # w1 (N-sliced)
        _weight_spec((1, tile_h), lambda i, h: (0, h)),            # b1
        _weight_spec((tile_h, D), lambda i, h: (h, 0)),            # w2 (K-sliced)
        pl.BlockSpec((1, D), lambda i, h: (0, 0),
                     pipeline_mode=pl.Buffered(1)),                # b2 (invariant)
    ]
    out_spec = pl.BlockSpec((tile_b, D), lambda i, h: (i, 0))

    return pl.pallas_call(
        _kd_kernel,
        out_shape=jax.ShapeDtypeStruct((B, D), target_features.dtype),
        grid_spec=pltpu.PrefetchScalarGridSpec(
            num_scalar_prefetch=0,
            grid=grid,
            in_specs=in_specs,
            out_specs=out_spec,
            scratch_shapes=[pltpu.VMEM((tile_b, D), jnp.float32)],
        ),
        compiler_params=pltpu.CompilerParams(
            # batch tiles independent; hidden axis is a reduction.
            # TODO(synk): on v7x, pltpu.CORE_PARALLEL on the batch axis splits
            # tiles across the two TensorCores.
            dimension_semantics=("parallel", "arbitrary"),
            vmem_limit_bytes=vmem_limit,
        ),
        cost_estimate=cost,
    )(target_features, source_features, w1, b1, w2, b2)


# --------------------------------------------------------------------------
# Pure-JAX reference
# --------------------------------------------------------------------------
def _reference(target_features, source_features, w1, b1, w2, b2):
    h = source_features @ w1 + b1
    h = 0.5 * h * (1.0 + jax.lax.erf(h / jnp.sqrt(2.0)))
    t = h @ w2 + b2
    return (1.0 - ALPHA) * target_features + ALPHA * t


if __name__ == "__main__":
    key = jax.random.PRNGKey(0)
    k_tgt, k_src, k_w1, k_b1, k_w2, k_b2 = jax.random.split(key, 6)

    B, D = 16, 256  # small demo shape: batch 16, feature_dim 256 (lane aligned)

    target = jax.random.normal(k_tgt, (B, D), dtype=jnp.float32)
    source = jax.random.normal(k_src, (B, D), dtype=jnp.float32)

    # Deterministic synthetic parameter init (shapes per nn.Linear(D, D)).
    scale = 1.0 / math.sqrt(D)
    w1 = jax.random.uniform(k_w1, (D, D), jnp.float32, -scale, scale)
    b1 = jax.random.uniform(k_b1, (1, D), jnp.float32, -scale, scale)
    w2 = jax.random.uniform(k_w2, (D, D), jnp.float32, -scale, scale)
    b2 = jax.random.uniform(k_b2, (1, D), jnp.float32, -scale, scale)

    ref = _reference(target, source, w1, b1, w2, b2)

    # 1) Default path: weights fully resident, single hidden step.
    out = knowledge_distillation(target, source, w1, b1, w2, b2)
    out = jax.block_until_ready(out)
    assert out.shape == (B, D)
    assert jnp.allclose(out, ref, atol=1e-4, rtol=1e-4), "fused path mismatch"

    # 2) Hidden-dim-tiled path (accumulator + multi batch tiles), exercised
    #    explicitly at small shapes to validate the large-D / v7x code path.
    out_t = knowledge_distillation(target, source, w1, b1, w2, b2,
                                   tile_b=8, tile_h=128)
    out_t = jax.block_until_ready(out_t)
    assert jnp.allclose(out_t, ref, atol=1e-4, rtol=1e-4), "h-tiled path mismatch"

    print("KERNEL_OK")
</pallas_src>

<mosaic_0001>
module attributes {stable_mosaic.version = 11 : i64} {
  func.func @_kd_kernel(%arg0: i32, %arg1: i32, %arg2: memref<16x256xf32, #tpu.memory_space<vmem>>, %arg3: memref<16x256xf32, #tpu.memory_space<vmem>>, %arg4: memref<256x256xf32, #tpu.memory_space<vmem>>, %arg5: memref<1x256xf32, #tpu.memory_space<vmem>>, %arg6: memref<256x256xf32, #tpu.memory_space<vmem>>, %arg7: memref<1x256xf32, #tpu.memory_space<vmem>>, %arg8: memref<16x256xf32, #tpu.memory_space<vmem>>, %arg9: memref<16x256xf32, #tpu.memory_space<vmem>>) attributes {dimension_semantics = [#tpu.dimension_semantics<parallel>, #tpu.dimension_semantics<arbitrary>], iteration_bounds = array<i64: 1, 1>, scalar_prefetch = 0 : i64, scratch_operands = 1 : i64, tpu.core_type = #tpu.core_type<tc>, window_params = [{transform_indices = @transform_0, window_bounds = array<i64: 16, 256>}, {transform_indices = @transform_1, window_bounds = array<i64: 16, 256>}, {pipeline_mode = #tpu.pipeline_mode<synchronous>, transform_indices = @transform_2, window_bounds = array<i64: 256, 256>}, {pipeline_mode = #tpu.pipeline_mode<synchronous>, transform_indices = @transform_3, window_bounds = array<i64: 1, 256>}, {pipeline_mode = #tpu.pipeline_mode<synchronous>, transform_indices = @transform_4, window_bounds = array<i64: 256, 256>}, {pipeline_mode = #tpu.pipeline_mode<synchronous>, transform_indices = @transform_5, window_bounds = array<i64: 1, 256>}, {transform_indices = @transform_6, window_bounds = array<i64: 16, 256>}]} {
    %c0_i32 = arith.constant 0 : i32
    %0 = arith.cmpi eq, %arg1, %c0_i32 : i32
    %1 = arith.extui %0 : i1 to i32
    %c0_i32_0 = arith.constant 0 : i32
    %2 = arith.cmpi ne, %1, %c0_i32_0 : i32
    scf.if %2 {
      %cst_18 = arith.constant 0.000000e+00 : f32
      %25 = vector.broadcast %cst_18 : f32 to vector<16x256xf32>
      %c0_19 = arith.constant 0 : index
      %c0_20 = arith.constant 0 : index
      %26 = vector.load %arg9[%c0_19, %c0_20] : memref<16x256xf32, #tpu.memory_space<vmem>>, vector<16x256xf32>
      tpu.vector_store %arg9[%c0_19, %c0_20], %25 {strides = array<i32>} : memref<16x256xf32, #tpu.memory_space<vmem>>, vector<16x256xf32>,
    } else {
    }
    %c0 = arith.constant 0 : index
    %c0_1 = arith.constant 0 : index
    %3 = vector.load %arg3[%c0, %c0_1] : memref<16x256xf32, #tpu.memory_space<vmem>>, vector<16x256xf32>
    %c0_2 = arith.constant 0 : index
    %c0_3 = arith.constant 0 : index
    %4 = vector.load %arg4[%c0_2, %c0_3] : memref<256x256xf32, #tpu.memory_space<vmem>>, vector<256x256xf32>
    %cst = arith.constant dense<0.000000e+00> : vector<16x256xf32>
    %5 = tpu.matmul %3, %4, %cst {dimension_numbers = #tpu.dot_dimension_numbers<[1], [0], [0], [1], [0, 0, 1, 1], [], []>} : vector<16x256xf32>, vector<256x256xf32>, vector<16x256xf32> -> vector<16x256xf32>
    %c0_4 = arith.constant 0 : index
    %c0_5 = arith.constant 0 : index
    %6 = vector.load %arg5[%c0_4, %c0_5] : memref<1x256xf32, #tpu.memory_space<vmem>>, vector<1x256xf32>
    %7 = vector.broadcast %6 : vector<1x256xf32> to vector<16x256xf32>
    %8 = arith.addf %5, %7 : vector<16x256xf32>
    %cst_6 = arith.constant 5.000000e-01 : f32
    %9 = vector.broadcast %cst_6 : f32 to vector<16x256xf32>
    %10 = arith.mulf %9, %8 : vector<16x256xf32>
    %cst_7 = arith.constant 0.707106769 : f32
    %11 = vector.broadcast %cst_7 : f32 to vector<16x256xf32>
    %12 = arith.mulf %8, %11 : vector<16x256xf32>
    %13 = math.erf %12 : vector<16x256xf32>
    %cst_8 = arith.constant 1.000000e+00 : f32
    %14 = vector.broadcast %cst_8 : f32 to vector<16x256xf32>
    %15 = arith.addf %14, %13 : vector<16x256xf32>
    %16 = arith.mulf %10, %15 : vector<16x256xf32>
    %c0_9 = arith.constant 0 : index
    %c0_10 = arith.constant 0 : index
    %17 = vector.load %arg9[%c0_9, %c0_10] : memref<16x256xf32, #tpu.memory_space<vmem>>, vector<16x256xf32>
    %c0_11 = arith.constant 0 : index
    %c0_12 = arith.constant 0 : index
    %18 = vector.load %arg6[%c0_11, %c0_12] : memref<256x256xf32, #tpu.memory_space<vmem>>, vector<256x256xf32>
    %cst_13 = arith.constant dense<0.000000e+00> : vector<16x256xf32>
    %19 = tpu.matmul %16, %18, %cst_13 {dimension_numbers = #tpu.dot_dimension_numbers<[1], [0], [0], [1], [0, 0, 1, 1], [], []>} : vector<16x256xf32>, vector<256x256xf32>, vector<16x256xf32> -> vector<16x256xf32>
    %20 = arith.addf %17, %19 : vector<16x256xf32>
    %c0_14 = arith.constant 0 : index
    %c0_15 = arith.constant 0 : index
    %21 = vector.load %arg9[%c0_14, %c0_15] : memref<16x256xf32, #tpu.memory_space<vmem>>, vector<16x256xf32>
    tpu.vector_store %arg9[%c0_14, %c0_15], %20 {strides = array<i32>} : memref<16x256xf32, #tpu.memory_space<vmem>>, vector<16x256xf32>,
    %c0_i32_16 = arith.constant 0 : i32
    %22 = arith.cmpi eq, %arg1, %c0_i32_16 : i32
    %23 = arith.extui %22 : i1 to i32
    %c0_i32_17 = arith.constant 0 : i32
    %24 = arith.cmpi ne, %23, %c0_i32_17 : i32
    scf.if %24 {
      %c0_18 = arith.constant 0 : index
      %c0_19 = arith.constant 0 : index
      %25 = vector.load %arg9[%c0_18, %c0_19] : memref<16x256xf32, #tpu.memory_space<vmem>>, vector<16x256xf32>
      %c0_20 = arith.constant 0 : index
      %c0_21 = arith.constant 0 : index
      %26 = vector.load %arg7[%c0_20, %c0_21] : memref<1x256xf32, #tpu.memory_space<vmem>>, vector<1x256xf32>
      %27 = vector.broadcast %26 : vector<1x256xf32> to vector<16x256xf32>
      %28 = arith.addf %25, %27 : vector<16x256xf32>
      %c0_22 = arith.constant 0 : index
      %c0_23 = arith.constant 0 : index
      %29 = vector.load %arg2[%c0_22, %c0_23] : memref<16x256xf32, #tpu.memory_space<vmem>>, vector<16x256xf32>
      %cst_24 = arith.constant 0.699999988 : f32
      %30 = vector.broadcast %cst_24 : f32 to vector<16x256xf32>
      %31 = arith.mulf %30, %29 : vector<16x256xf32>
      %cst_25 = arith.constant 3.000000e-01 : f32
      %32 = vector.broadcast %cst_25 : f32 to vector<16x256xf32>
      %33 = arith.mulf %32, %28 : vector<16x256xf32>
      %34 = arith.addf %31, %33 : vector<16x256xf32>
      %c0_26 = arith.constant 0 : index
      %c0_27 = arith.constant 0 : index
      %35 = vector.load %arg8[%c0_26, %c0_27] : memref<16x256xf32, #tpu.memory_space<vmem>>, vector<16x256xf32>
      tpu.vector_store %arg8[%c0_26, %c0_27], %34 {strides = array<i32>} : memref<16x256xf32, #tpu.memory_space<vmem>>, vector<16x256xf32>,
    } else {
    }
    return
  }
  func.func @transform_0(%arg0: i32, %arg1: i32) -> (i32, i32) {
    %c0_i32 = arith.constant 0 : i32
    %c0_i32_0 = arith.constant 0 : i32
    return %arg0, %c0_i32 : i32, i32
  }
  func.func @transform_1(%arg0: i32, %arg1: i32) -> (i32, i32) {
    %c0_i32 = arith.constant 0 : i32
    %c0_i32_0 = arith.constant 0 : i32
    return %arg0, %c0_i32 : i32, i32
  }
  func.func @transform_2(%arg0: i32, %arg1: i32) -> (i32, i32) {
    %c0_i32 = arith.constant 0 : i32
    %c0_i32_0 = arith.constant 0 : i32
    return %c0_i32, %arg1 : i32, i32
  }
  func.func @transform_3(%arg0: i32, %arg1: i32) -> (i32, i32) {
    %c0_i32 = arith.constant 0 : i32
    %c0_i32_0 = arith.constant 0 : i32
    return %c0_i32, %arg1 : i32, i32
  }
  func.func @transform_4(%arg0: i32, %arg1: i32) -> (i32, i32) {
    %c0_i32 = arith.constant 0 : i32
    %c0_i32_0 = arith.constant 0 : i32
    return %arg1, %c0_i32 : i32, i32
  }
  func.func @transform_5(%arg0: i32, %arg1: i32) -> (i32, i32) {
    %c0_i32 = arith.constant 0 : i32
    %c0_i32_0 = arith.constant 0 : i32
    %c0_i32_1 = arith.constant 0 : i32
    return %c0_i32, %c0_i32_0 : i32, i32
  }
  func.func @transform_6(%arg0: i32, %arg1: i32) -> (i32, i32) {
    %c0_i32 = arith.constant 0 : i32
    %c0_i32_0 = arith.constant 0 : i32
    return %arg0, %c0_i32 : i32, i32
  }
}

</mosaic_0001>

<llo_original>
// kernel: tpu_custom_call.1
$region0: #{tpu_custom_call.1}
  #allocation0 [shape = 'u32[]', space=smem, size = 0x4, offset = 0x4, fixed_abs, tag = 'smem constant byte address 0x4 - core index']
  #allocation1 [shape = 'u32[144,128]{1,0:T(1,128)}', space=vmem, size = 0x12000, scoped, tag = 'internal scratch']
  #allocation2 [shape = 'f32[16,256]{1,0:T(8,128)}', space=vmem, size = 0x4000, scoped, tag = 'scratch operand']
  %s0 = inlined_call_operand.hbm [shape: f32[16,256], index: 0, kind: input, shape index: {}]
  %s1 = inlined_call_operand.hbm [shape: f32[16,256], index: 1, kind: input, shape index: {}]
  %s2 = inlined_call_operand.hbm [shape: f32[256,256], index: 2, kind: input, shape index: {}]
  %s3 = inlined_call_operand.vmem [shape: f32[1,256], index: 3, kind: input, shape index: {}]
  %s4 = inlined_call_operand.hbm [shape: f32[256,256], index: 4, kind: input, shape index: {}]
  %s5 = inlined_call_operand.vmem [shape: f32[1,256], index: 5, kind: input, shape index: {}]
  %s6 = inlined_call_operand.hbm [shape: f32[16,256], index: 6, kind: output, shape index: {}]
  %s7 = sld [smem:[#allocation0]]
  $region58: #{tpu_custom_call.1} parent=0
    _
  %s9 = ssub.s32 1, %s7
  %s10 = scalar_select 0, %s9, %s7
  $region1: #{tpu_custom_call.1} parent=0
    #allocation3 [shape = 'u8[16384]{0}', space=vmem, size = 0x4000, scoped, tag = 'input window, operand 0, single buffered']
    #allocation4 [shape = 's32[1]{0}', space=sflag, size = 0x4, scoped, tag = 'scoped memory for tpu_custom_call.1']
    #allocation5 [shape = 's32[1]{0}', space=sflag, size = 0x4, scoped, tag = 'scoped memory for tpu_custom_call.1']
    #allocation6 [shape = 'u8[16384]{0}', space=vmem, size = 0x4000, scoped, tag = 'input window, operand 1, single buffered']
    #allocation7 [shape = 's32[1]{0}', space=sflag, size = 0x4, scoped, tag = 'scoped memory for tpu_custom_call.1']
    #allocation8 [shape = 'u8[262144]{0}', space=vmem, size = 0x40000, scoped, tag = 'input window, operand 2, single buffered']
    #allocation9 [shape = 'u8[262144]{0}', space=vmem, size = 0x40000, scoped, tag = 'input window, operand 4, single buffered']
    #allocation10 [shape = 's32[1]{0}', space=sflag, size = 0x4, scoped, tag = 'scoped memory for tpu_custom_call.1']
    #allocation11 [shape = 'u8[16384]{0}', space=vmem, size = 0x4000, scoped, tag = 'output window, operand 0, single buffered']
    %11 = vsyncpa [#allocation4], 0
    %12 = vsyncpa [#allocation7], 0
    %13 = vsyncpa [#allocation10], 0
    %14 = vsyncpa [#allocation5], 0
    // Predicated region
    $region2: #{tpu_custom_call.1} parent=1 // pred_check
      _
    $region3: #{tpu_custom_call.1} parent=1 // pred_check_branch
      %16 = sbr.rel (0) target = $region5
    $region4: #{tpu_custom_call.1} parent=1 // pred_region
      %s18 = ssub.s32 512, 512
      %19 = vsyncadd [#allocation4], %s18
      %s20 = sshll.u32 [#allocation3], 4
      %s21 = int_to_ptr.vmem [resolvable:$true] %s20
      %26 = dma.hbm_to_vmem [thread:$0]  %s0, 512, %s21, [#allocation4], 256, 256, 16
    $region5: #{tpu_custom_call.1} parent=1 // pred_fallthru
      _
    // Predicated region
    $region6: #{tpu_custom_call.1} parent=1 // pred_check
      _
    $region7: #{tpu_custom_call.1} parent=1 // pred_check_branch
      %28 = sbr.rel (0) target = $region9
    $region8: #{tpu_custom_call.1} parent=1 // pred_region
      %s30 = ssub.s32 512, 512
      %31 = vsyncadd [#allocation7], %s30
      %s32 = sshll.u32 [#allocation6], 4
      %s33 = int_to_ptr.vmem [resolvable:$true] %s32
      %38 = dma.hbm_to_vmem [thread:$0]  %s1, 512, %s33, [#allocation7], 256, 256, 16
    $region9: #{tpu_custom_call.1} parent=1 // pred_fallthru
      _
    // Predicated region
    $region10: #{tpu_custom_call.1} parent=1 // pred_check
      _
    $region11: #{tpu_custom_call.1} parent=1 // pred_check_branch
      %40 = sbr.rel (0) target = $region13
    $region12: #{tpu_custom_call.1} parent=1 // pred_region
      %s42 = ssub.s32 8192, 8192
      %43 = vsyncadd [#allocation7], %s42
      %s44 = sshll.u32 [#allocation8], 4
      %s45 = int_to_ptr.vmem [resolvable:$true] %s44
      %50 = dma.hbm_to_vmem [thread:$0]  %s2, 8192, %s45, [#allocation7], 256, 256, 16
    $region13: #{tpu_custom_call.1} parent=1 // pred_fallthru
      _
    // Predicated region
    $region14: #{tpu_custom_call.1} parent=1 // pred_check
      _
    $region15: #{tpu_custom_call.1} parent=1 // pred_check_branch
      %52 = sbr.rel (0) target = $region17
    $region16: #{tpu_custom_call.1} parent=1 // pred_region
      _
    $region17: #{tpu_custom_call.1} parent=1 // pred_fallthru
      _
    // Predicated region
    $region18: #{tpu_custom_call.1} parent=1 // pred_check
      _
    $region19: #{tpu_custom_call.1} parent=1 // pred_check_branch
      %54 = sbr.rel (0) target = $region21
    $region20: #{tpu_custom_call.1} parent=1 // pred_region
      %s56 = ssub.s32 8192, 8192
      %57 = vsyncadd [#allocation10], %s56
      %s58 = sshll.u32 [#allocation9], 4
      %s59 = int_to_ptr.vmem [resolvable:$true] %s58
      %64 = dma.hbm_to_vmem [thread:$0]  %s4, 8192, %s59, [#allocation10], 256, 256, 16
    $region21: #{tpu_custom_call.1} parent=1 // pred_fallthru
      _
    // Predicated region
    $region22: #{tpu_custom_call.1} parent=1 // pred_check
      _
    $region23: #{tpu_custom_call.1} parent=1 // pred_check_branch
      %66 = sbr.rel (0) target = $region25
    $region24: #{tpu_custom_call.1} parent=1 // pred_region
      _
    $region25: #{tpu_custom_call.1} parent=1 // pred_fallthru
      _
    // Predicated region
    $region26: #{tpu_custom_call.1} parent=1 // pred_check
      _
    $region27: #{tpu_custom_call.1} parent=1 // pred_check_branch
      %68 = sbr.rel (0) target = $region29
    $region28: #{tpu_custom_call.1} parent=1 // pred_region
      %69 = dma.done [#allocation4], 512
    $region29: #{tpu_custom_call.1} parent=1 // pred_fallthru
      _
    // Predicated region
    $region30: #{tpu_custom_call.1} parent=1 // pred_check
      _
    $region31: #{tpu_custom_call.1} parent=1 // pred_check_branch
      %71 = sbr.rel (0) target = $region33
    $region32: #{tpu_custom_call.1} parent=1 // pred_region
      %72 = dma.done [#allocation7], 512
    $region33: #{tpu_custom_call.1} parent=1 // pred_fallthru
      _
    // Predicated region
    $region34: #{tpu_custom_call.1} parent=1 // pred_check
      _
    $region35: #{tpu_custom_call.1} parent=1 // pred_check_branch
      %74 = sbr.rel (0) target = $region37
    $region36: #{tpu_custom_call.1} parent=1 // pred_region
      %75 = dma.done [#allocation7], 8192
    $region37: #{tpu_custom_call.1} parent=1 // pred_fallthru
      _
    // Predicated region
    $region38: #{tpu_custom_call.1} parent=1 // pred_check
      _
    $region39: #{tpu_custom_call.1} parent=1 // pred_check_branch
      %77 = sbr.rel (0) target = $region41
    $region40: #{tpu_custom_call.1} parent=1 // pred_region
      %78 = dma.done [#allocation10], 8192
    $region41: #{tpu_custom_call.1} parent=1 // pred_fallthru
      _
    %p79 = scmp.eq.s32.totalorder 0, 0
    // Predicated region
    $region42: #{tpu_custom_call.1} parent=1 // pred_check
      %p80 = pneg %p79
    $region43: #{tpu_custom_call.1} parent=1 // pred_check_branch
      %82 = sbr.rel (%p80) target = $region45
    $region44: #{tpu_custom_call.1} parent=1 // pred_region
      %83 = vst [vmem:[#allocation2] sm:$0xff] 0.0
      %84 = vst [vmem:[#allocation2 + $0x8] sm:$0xff] 0.0
      %85 = vst [vmem:[#allocation2 + $0x10] sm:$0xff] 0.0
      %86 = vst [vmem:[#allocation2 + $0x18] sm:$0xff] 0.0
    $region45: #{tpu_custom_call.1} parent=1 // pred_fallthru
      _
    %v87 = vld [vmem:[#allocation6] sm:$0xff]
    %v88 = vld [vmem:[#allocation6 + $0x8] sm:$0xff]
    %v89 = vld [vmem:[#allocation6 + $0x10] sm:$0xff]
    %v90 = vld [vmem:[#allocation6 + $0x18] sm:$0xff]
    %v91 = vld [vmem:[#allocation8] sm:$0xff]
    %v92 = vld [vmem:[#allocation8 + $0x8] sm:$0xff]
    %v93 = vld [vmem:[#allocation8 + $0x10] sm:$0xff]
    %v94 = vld [vmem:[#allocation8 + $0x18] sm:$0xff]
    %v95 = vld [vmem:[#allocation8 + $0x20] sm:$0xff]
    %v96 = vld [vmem:[#allocation8 + $0x28] sm:$0xff]
    %v97 = vld [vmem:[#allocation8 + $0x30] sm:$0xff]
    %v98 = vld [vmem:[#allocation8 + $0x38] sm:$0xff]
    %v99 = vld [vmem:[#allocation8 + $0x40] sm:$0xff]
    %v100 = vld [vmem:[#allocation8 + $0x48] sm:$0xff]
    %v101 = vld [vmem:[#allocation8 + $0x50] sm:$0xff]
    %v102 = vld [vmem:[#allocation8 + $0x58] sm:$0xff]
    %v103 = vld [vmem:[#allocation8 + $0x60] sm:$0xff]
    %v104 = vld [vmem:[#allocation8 + $0x68] sm:$0xff]
    %v105 = vld [vmem:[#allocation8 + $0x70] sm:$0xff]
    %v106 = vld [vmem:[#allocation8 + $0x78] sm:$0xff]
    %v107 = vld [vmem:[#allocation8 + $0x80] sm:$0xff]
    %v108 = vld [vmem:[#allocation8 + $0x88] sm:$0xff]
    %v109 = vld [vmem:[#allocation8 + $0x90] sm:$0xff]
    %v110 = vld [vmem:[#allocation8 + $0x98] sm:$0xff]
    %v111 = vld [vmem:[#allocation8 + $0xa0] sm:$0xff]
    %v112 = vld [vmem:[#allocation8 + $0xa8] sm:$0xff]
    %v113 = vld [vmem:[#allocation8 + $0xb0] sm:$0xff]
    %v114 = vld [vmem:[#allocation8 + $0xb8] sm:$0xff]
    %v115 = vld [vmem:[#allocation8 + $0xc0] sm:$0xff]
    %v116 = vld [vmem:[#allocation8 + $0xc8] sm:$0xff]
    %v117 = vld [vmem:[#allocation8 + $0xd0] sm:$0xff]
    %v118 = vld [vmem:[#allocation8 + $0xd8] sm:$0xff]
    %v119 = vld [vmem:[#allocation8 + $0xe0] sm:$0xff]
    %v120 = vld [vmem:[#allocation8 + $0xe8] sm:$0xff]
    %v121 = vld [vmem:[#allocation8 + $0xf0] sm:$0xff]
    %v122 = vld [vmem:[#allocation8 + $0xf8] sm:$0xff]
    %v123 = vld [vmem:[#allocation8 + $0x100] sm:$0xff]
    %v124 = vld [vmem:[#allocation8 + $0x108] sm:$0xff]
    %v125 = vld [vmem:[#allocation8 + $0x110] sm:$0xff]
    %v126 = vld [vmem:[#allocation8 + $0x118] sm:$0xff]
    %v127 = vld [vmem:[#allocation8 + $0x120] sm:$0xff]
    %v128 = vld [vmem:[#allocation8 + $0x128] sm:$0xff]
    %v129 = vld [vmem:[#allocation8 + $0x130] sm:$0xff]
    %v130 = vld [vmem:[#allocation8 + $0x138] sm:$0xff]
    %v131 = vld [vmem:[#allocation8 + $0x140] sm:$0xff]
    %v132 = vld [vmem:[#allocation8 + $0x148] sm:$0xff]
    %v133 = vld [vmem:[#allocation8 + $0x150] sm:$0xff]
    %v134 = vld [vmem:[#allocation8 + $0x158] sm:$0xff]
    %v135 = vld [vmem:[#allocation8 + $0x160] sm:$0xff]
    %v136 = vld [vmem:[#allocation8 + $0x168] sm:$0xff]
    %v137 = vld [vmem:[#allocation8 + $0x170] sm:$0xff]
    %v138 = vld [vmem:[#allocation8 + $0x178] sm:$0xff]
    %v139 = vld [vmem:[#allocation8 + $0x180] sm:$0xff]
    %v140 = vld [vmem:[#allocation8 + $0x188] sm:$0xff]
    %v141 = vld [vmem:[#allocation8 + $0x190] sm:$0xff]
    %v142 = vld [vmem:[#allocation8 + $0x198] sm:$0xff]
    %v143 = vld [vmem:[#allocation8 + $0x1a0] sm:$0xff]
    %v144 = vld [vmem:[#allocation8 + $0x1a8] sm:$0xff]
    %v145 = vld [vmem:[#allocation8 + $0x1b0] sm:$0xff]
    %v146 = vld [vmem:[#allocation8 + $0x1b8] sm:$0xff]
    %v147 = vld [vmem:[#allocation8 + $0x1c0] sm:$0xff]
    %v148 = vld [vmem:[#allocation8 + $0x1c8] sm:$0xff]
    %v149 = vld [vmem:[#allocation8 + $0x1d0] sm:$0xff]
    %v150 = vld [vmem:[#allocation8 + $0x1d8] sm:$0xff]
    %v151 = vld [vmem:[#allocation8 + $0x1e0] sm:$0xff]
    %v152 = vld [vmem:[#allocation8 + $0x1e8] sm:$0xff]
    %v153 = vld [vmem:[#allocation8 + $0x1f0] sm:$0xff]
    %v154 = vld [vmem:[#allocation8 + $0x1f8] sm:$0xff]
    %v155 = vld [vmem:[%s3] sm:$0x3]
    %v157 = vlaneseq
    %v158 = vshrl.u32 %v157, 7
    %v159 = vsub.s32 0, %v158
    %v160 = vrot.slane %v155, %v159
    %v161 = vlaneseq
    %v162 = vshrl.u32 %v161, 7
    %v163 = vsub.s32 1, %v162
    %v164 = vrot.slane %v155, %v163
    %167 = vmatprep.subr.mxu0 %v122
    %168 = vmatpush1.msra.mxu0 %v121
    %169 = vmatprep.subr.mxu0 %v120
    %170 = vmatpush1.msra.mxu0 %v119
    %171 = vmatprep.subr.mxu0 %v118
    %172 = vmatpush1.msra.mxu0 %v117
    %173 = vmatprep.subr.mxu0 %v116
    %174 = vmatpush1.msra.mxu0 %v115
    %175 = vmatprep.subr.mxu0 %v114
    %176 = vmatpush1.msra.mxu0 %v113
    %177 = vmatprep.subr.mxu0 %v112
    %178 = vmatpush1.msra.mxu0 %v111
    %179 = vmatprep.subr.mxu0 %v110
    %180 = vmatpush1.msra.mxu0 %v109
    %181 = vmatprep.subr.mxu0 %v108
    %182 = vmatpush1.msra.mxu0 %v107
    %183 = vmatprep.subr.mxu0 %v106
    %184 = vmatpush1.msra.mxu0 %v105
    %185 = vmatprep.subr.mxu0 %v104
    %186 = vmatpush1.msra.mxu0 %v103
    %187 = vmatprep.subr.mxu0 %v102
    %188 = vmatpush1.msra.mxu0 %v101
    %189 = vmatprep.subr.mxu0 %v100
    %190 = vmatpush1.msra.mxu0 %v99
    %191 = vmatprep.subr.mxu0 %v98
    %192 = vmatpush1.msra.mxu0 %v97
    %193 = vmatprep.subr.mxu0 %v96
    %194 = vmatpush1.msra.mxu0 %v95
    %195 = vmatprep.subr.mxu0 %v94
    %196 = vmatpush1.msra.mxu0 %v93
    %197 = vmatprep.subr.mxu0 %v92
    %198 = vmatpush1.msra.mxu0 %v91
    %199 = vmatprep.subr.mxu0 %v154
    %200 = vmatpush2.msra.mxu0 %v153
    %201 = vmatprep.subr.mxu0 %v152
    %202 = vmatpush2.msra.mxu0 %v151
    %203 = vmatprep.subr.mxu0 %v150
    %204 = vmatpush2.msra.mxu0 %v149
    %205 = vmatprep.subr.mxu0 %v148
    %206 = vmatpush2.msra.mxu0 %v147
    %207 = vmatprep.subr.mxu0 %v146
    %208 = vmatpush2.msra.mxu0 %v145
    %209 = vmatprep.subr.mxu0 %v144
    %210 = vmatpush2.msra.mxu0 %v143
    %211 = vmatprep.subr.mxu0 %v142
    %212 = vmatpush2.msra.mxu0 %v141
    %213 = vmatprep.subr.mxu0 %v140
    %214 = vmatpush2.msra.mxu0 %v139
    %215 = vmatprep.subr.mxu0 %v138
    %216 = vmatpush2.msra.mxu0 %v137
    %217 = vmatprep.subr.mxu0 %v136
    %218 = vmatpush2.msra.mxu0 %v135
    %219 = vmatprep.subr.mxu0 %v134
    %220 = vmatpush2.msra.mxu0 %v133
    %221 = vmatprep.subr.mxu0 %v132
    %222 = vmatpush2.msra.mxu0 %v131
    %223 = vmatprep.subr.mxu0 %v130
    %224 = vmatpush2.msra.mxu0 %v129
    %225 = vmatprep.subr.mxu0 %v128
    %226 = vmatpush2.msra.mxu0 %v127
    %227 = vmatprep.subr.mxu0 %v126
    %228 = vmatpush2.msra.mxu0 %v125
    %229 = vmatprep.subr.mxu0 %v124
    %230 = vmatpush2.msra.mxu0 %v123
    %231 = vmatprep.mubr.f32.mxu0 %v88
    %232 = vmatmul.mubr.f32.gmra.mxu0 %v87
    %v233 = vpop.f32.mrf.mxu0
    %v234 = vadd.f32 %v160, %v233
    %v235 = vpop.f32.mrf.mxu0
    %v236 = vadd.f32 %v164, %v235
    %237 = vmatprep.mubr.f32.mxu0 %v90
    %238 = vmatmul.mubr.f32.gmra.mxu0 %v89
    %v239 = vpop.f32.mrf.mxu0
    %v240 = vadd.f32 %v160, %v239
    %v241 = vpop.f32.mrf.mxu0
    %v242 = vadd.f32 %v164, %v241
    %243 = vdwg.mxu0
    %v244 = vmul.f32 %v234, 0.5
    %v245 = vmul.f32 %v236, 0.5
    %v246 = vmul.f32 %v240, 0.5
    %v247 = vmul.f32 %v242, 0.5
    %v248 = vmul.f32 %v234, 0.70710677
    %v249 = vmul.f32 %v236, 0.70710677
    %v250 = vmul.f32 %v240, 0.70710677
    %v251 = vmul.f32 %v242, 0.70710677
    %v252 = verf.f32.pop %v248
    %v253 = verf.f32.pop %v249
    %v254 = verf.f32.pop %v250
    %v255 = verf.f32.pop %v251
    %v256 = vadd.f32 %v252, 1.0
    %v257 = vadd.f32 %v253, 1.0
    %v258 = vadd.f32 %v254, 1.0
    %v259 = vadd.f32 %v255, 1.0
    %v260 = vmul.f32 %v244, %v256
    %v261 = vmul.f32 %v245, %v257
    %v262 = vmul.f32 %v246, %v258
    %v263 = vmul.f32 %v247, %v259
    %v264 = vld [vmem:[#allocation2] sm:$0xff]
    %v265 = vld [vmem:[#allocation2 + $0x8] sm:$0xff]
    %v266 = vld [vmem:[#allocation2 + $0x10] sm:$0xff]
    %v267 = vld [vmem:[#allocation2 + $0x18] sm:$0xff]
    %v268 = vld [vmem:[#allocation9] sm:$0xff]
    %v269 = vld [vmem:[#allocation9 + $0x8] sm:$0xff]
    %v270 = vld [vmem:[#allocation9 + $0x10] sm:$0xff]
    %v271 = vld [vmem:[#allocation9 + $0x18] sm:$0xff]
    %v272 = vld [vmem:[#allocation9 + $0x20] sm:$0xff]
    %v273 = vld [vmem:[#allocation9 + $0x28] sm:$0xff]
    %v274 = vld [vmem:[#allocation9 + $0x30] sm:$0xff]
    %v275 = vld [vmem:[#allocation9 + $0x38] sm:$0xff]
    %v276 = vld [vmem:[#allocation9 + $0x40] sm:$0xff]
    %v277 = vld [vmem:[#allocation9 + $0x48] sm:$0xff]
    %v278 = vld [vmem:[#allocation9 + $0x50] sm:$0xff]
    %v279 = vld [vmem:[#allocation9 + $0x58] sm:$0xff]
    %v280 = vld [vmem:[#allocation9 + $0x60] sm:$0xff]
    %v281 = vld [vmem:[#allocation9 + $0x68] sm:$0xff]
    %v282 = vld [vmem:[#allocation9 + $0x70] sm:$0xff]
    %v283 = vld [vmem:[#allocation9 + $0x78] sm:$0xff]
    %v284 = vld [vmem:[#allocation9 + $0x80] sm:$0xff]
    %v285 = vld [vmem:[#allocation9 + $0x88] sm:$0xff]
    %v286 = vld [vmem:[#allocation9 + $0x90] sm:$0xff]
    %v287 = vld [vmem:[#allocation9 + $0x98] sm:$0xff]
    %v288 = vld [vmem:[#allocation9 + $0xa0] sm:$0xff]
    %v289 = vld [vmem:[#allocation9 + $0xa8] sm:$0xff]
    %v290 = vld [vmem:[#allocation9 + $0xb0] sm:$0xff]
    %v291 = vld [vmem:[#allocation9 + $0xb8] sm:$0xff]
    %v292 = vld [vmem:[#allocation9 + $0xc0] sm:$0xff]
    %v293 = vld [vmem:[#allocation9 + $0xc8] sm:$0xff]
    %v294 = vld [vmem:[#allocation9 + $0xd0] sm:$0xff]
    %v295 = vld [vmem:[#allocation9 + $0xd8] sm:$0xff]
    %v296 = vld [vmem:[#allocation9 + $0xe0] sm:$0xff]
    %v297 = vld [vmem:[#allocation9 + $0xe8] sm:$0xff]
    %v298 = vld [vmem:[#allocation9 + $0xf0] sm:$0xff]
    %v299 = vld [vmem:[#allocation9 + $0xf8] sm:$0xff]
    %v300 = vld [vmem:[#allocation9 + $0x100] sm:$0xff]
    %v301 = vld [vmem:[#allocation9 + $0x108] sm:$0xff]
    %v302 = vld [vmem:[#allocation9 + $0x110] sm:$0xff]
    %v303 = vld [vmem:[#allocation9 + $0x118] sm:$0xff]
    %v304 = vld [vmem:[#allocation9 + $0x120] sm:$0xff]
    %v305 = vld [vmem:[#allocation9 + $0x128] sm:$0xff]
    %v306 = vld [vmem:[#allocation9 + $0x130] sm:$0xff]
    %v307 = vld [vmem:[#allocation9 + $0x138] sm:$0xff]
    %v308 = vld [vmem:[#allocation9 + $0x140] sm:$0xff]
    %v309 = vld [vmem:[#allocation9 + $0x148] sm:$0xff]
    %v310 = vld [vmem:[#allocation9 + $0x150] sm:$0xff]
    %v311 = vld [vmem:[#allocation9 + $0x158] sm:$0xff]
    %v312 = vld [vmem:[#allocation9 + $0x160] sm:$0xff]
    %v313 = vld [vmem:[#allocation9 + $0x168] sm:$0xff]
    %v314 = vld [vmem:[#allocation9 + $0x170] sm:$0xff]
    %v315 = vld [vmem:[#allocation9 + $0x178] sm:$0xff]
    %v316 = vld [vmem:[#allocation9 + $0x180] sm:$0xff]
    %v317 = vld [vmem:[#allocation9 + $0x188] sm:$0xff]
    %v318 = vld [vmem:[#allocation9 + $0x190] sm:$0xff]
    %v319 = vld [vmem:[#allocation9 + $0x198] sm:$0xff]
    %v320 = vld [vmem:[#allocation9 + $0x1a0] sm:$0xff]
    %v321 = vld [vmem:[#allocation9 + $0x1a8] sm:$0xff]
    %v322 = vld [vmem:[#allocation9 + $0x1b0] sm:$0xff]
    %v323 = vld [vmem:[#allocation9 + $0x1b8] sm:$0xff]
    %v324 = vld [vmem:[#allocation9 + $0x1c0] sm:$0xff]
    %v325 = vld [vmem:[#allocation9 + $0x1c8] sm:$0xff]
    %v326 = vld [vmem:[#allocation9 + $0x1d0] sm:$0xff]
    %v327 = vld [vmem:[#allocation9 + $0x1d8] sm:$0xff]
    %v328 = vld [vmem:[#allocation9 + $0x1e0] sm:$0xff]
    %v329 = vld [vmem:[#allocation9 + $0x1e8] sm:$0xff]
    %v330 = vld [vmem:[#allocation9 + $0x1f0] sm:$0xff]
    %v331 = vld [vmem:[#allocation9 + $0x1f8] sm:$0xff]
    %332 = vmatprep.subr.mxu0 %v299
    %333 = vmatpush1.msra.mxu0 %v298
    %334 = vmatprep.subr.mxu0 %v297
    %335 = vmatpush1.msra.mxu0 %v296
    %336 = vmatprep.subr.mxu0 %v295
    %337 = vmatpush1.msra.mxu0 %v294
    %338 = vmatprep.subr.mxu0 %v293
    %339 = vmatpush1.msra.mxu0 %v292
    %340 = vmatprep.subr.mxu0 %v291
    %341 = vmatpush1.msra.mxu0 %v290
    %342 = vmatprep.subr.mxu0 %v289
    %343 = vmatpush1.msra.mxu0 %v288
    %344 = vmatprep.subr.mxu0 %v287
    %345 = vmatpush1.msra.mxu0 %v286
    %346 = vmatprep.subr.mxu0 %v285
    %347 = vmatpush1.msra.mxu0 %v284
    %348 = vmatprep.subr.mxu0 %v283
    %349 = vmatpush1.msra.mxu0 %v282
    %350 = vmatprep.subr.mxu0 %v281
    %351 = vmatpush1.msra.mxu0 %v280
    %352 = vmatprep.subr.mxu0 %v279
    %353 = vmatpush1.msra.mxu0 %v278
    %354 = vmatprep.subr.mxu0 %v277
    %355 = vmatpush1.msra.mxu0 %v276
    %356 = vmatprep.subr.mxu0 %v275
    %357 = vmatpush1.msra.mxu0 %v274
    %358 = vmatprep.subr.mxu0 %v273
    %359 = vmatpush1.msra.mxu0 %v272
    %360 = vmatprep.subr.mxu0 %v271
    %361 = vmatpush1.msra.mxu0 %v270
    %362 = vmatprep.subr.mxu0 %v269
    %363 = vmatpush1.msra.mxu0 %v268
    %364 = vmatprep.subr.mxu0 %v331
    %365 = vmatpush2.msra.mxu0 %v330
    %366 = vmatprep.subr.mxu0 %v329
    %367 = vmatpush2.msra.mxu0 %v328
    %368 = vmatprep.subr.mxu0 %v327
    %369 = vmatpush2.msra.mxu0 %v326
    %370 = vmatprep.subr.mxu0 %v325
    %371 = vmatpush2.msra.mxu0 %v324
    %372 = vmatprep.subr.mxu0 %v323
    %373 = vmatpush2.msra.mxu0 %v322
    %374 = vmatprep.subr.mxu0 %v321
    %375 = vmatpush2.msra.mxu0 %v320
    %376 = vmatprep.subr.mxu0 %v319
    %377 = vmatpush2.msra.mxu0 %v318
    %378 = vmatprep.subr.mxu0 %v317
    %379 = vmatpush2.msra.mxu0 %v316
    %380 = vmatprep.subr.mxu0 %v315
    %381 = vmatpush2.msra.mxu0 %v314
    %382 = vmatprep.subr.mxu0 %v313
    %383 = vmatpush2.msra.mxu0 %v312
    %384 = vmatprep.subr.mxu0 %v311
    %385 = vmatpush2.msra.mxu0 %v310
    %386 = vmatprep.subr.mxu0 %v309
    %387 = vmatpush2.msra.mxu0 %v308
    %388 = vmatprep.subr.mxu0 %v307
    %389 = vmatpush2.msra.mxu0 %v306
    %390 = vmatprep.subr.mxu0 %v305
    %391 = vmatpush2.msra.mxu0 %v304
    %392 = vmatprep.subr.mxu0 %v303
    %393 = vmatpush2.msra.mxu0 %v302
    %394 = vmatprep.subr.mxu0 %v301
    %395 = vmatpush2.msra.mxu0 %v300
    %396 = vmatprep.mubr.f32.mxu0 %v261
    %397 = vmatmul.mubr.f32.gmra.mxu0 %v260
    %v398 = vpop.f32.mrf.mxu0
    %v399 = vadd.f32 0.0, %v398
    %v400 = vpop.f32.mrf.mxu0
    %v401 = vadd.f32 0.0, %v400
    %402 = vmatprep.mubr.f32.mxu0 %v263
    %403 = vmatmul.mubr.f32.gmra.mxu0 %v262
    %v404 = vpop.f32.mrf.mxu0
    %v405 = vadd.f32 0.0, %v404
    %v406 = vpop.f32.mrf.mxu0
    %v407 = vadd.f32 0.0, %v406
    %408 = vdwg.mxu0
    %v409 = vadd.f32 %v264, %v399
    %v410 = vadd.f32 %v265, %v401
    %v411 = vadd.f32 %v266, %v405
    %v412 = vadd.f32 %v267, %v407
    %413 = vst [vmem:[#allocation2] sm:$0xff] %v409
    %414 = vst [vmem:[#allocation2 + $0x8] sm:$0xff] %v410
    %415 = vst [vmem:[#allocation2 + $0x10] sm:$0xff] %v411
    %416 = vst [vmem:[#allocation2 + $0x18] sm:$0xff] %v412
    // Predicated region
    $region46: #{tpu_custom_call.1} parent=1 // pred_check
      %p417 = pneg %p79
    $region47: #{tpu_custom_call.1} parent=1 // pred_check_branch
      %419 = sbr.rel (%p417) target = $region49
    $region48: #{tpu_custom_call.1} parent=1 // pred_region
      %v420 = vld [vmem:[#allocation2] sm:$0xff]
      %v421 = vld [vmem:[#allocation2 + $0x8] sm:$0xff]
      %v422 = vld [vmem:[#allocation2 + $0x10] sm:$0xff]
      %v423 = vld [vmem:[#allocation2 + $0x18] sm:$0xff]
      %v424 = vld [vmem:[%s5] sm:$0x3]
      %v426 = vlaneseq
      %v427 = vshrl.u32 %v426, 7
      %v428 = vsub.s32 0, %v427
      %v429 = vrot.slane %v424, %v428
      %v430 = vlaneseq
      %v431 = vshrl.u32 %v430, 7
      %v432 = vsub.s32 1, %v431
      %v433 = vrot.slane %v424, %v432
      %v436 = vadd.f32 %v420, %v429
      %v437 = vadd.f32 %v421, %v433
      %v438 = vadd.f32 %v422, %v429
      %v439 = vadd.f32 %v423, %v433
      %v440 = vld [vmem:[#allocation3] sm:$0xff]
      %v441 = vld [vmem:[#allocation3 + $0x8] sm:$0xff]
      %v442 = vld [vmem:[#allocation3 + $0x10] sm:$0xff]
      %v443 = vld [vmem:[#allocation3 + $0x18] sm:$0xff]
      %v444 = vmul.f32 %v440, 0.7
      %v445 = vmul.f32 %v441, 0.7
      %v446 = vmul.f32 %v442, 0.7
      %v447 = vmul.f32 %v443, 0.7
      %v448 = vmul.f32 %v436, 0.3
      %v449 = vmul.f32 %v437, 0.3
      %v450 = vmul.f32 %v438, 0.3
      %v451 = vmul.f32 %v439, 0.3
      %v452 = vadd.f32 %v444, %v448
      %v453 = vadd.f32 %v445, %v449
      %v454 = vadd.f32 %v446, %v450
      %v455 = vadd.f32 %v447, %v451
      %456 = vst [vmem:[#allocation11] sm:$0xff] %v452
      %457 = vst [vmem:[#allocation11 + $0x8] sm:$0xff] %v453
      %458 = vst [vmem:[#allocation11 + $0x10] sm:$0xff] %v454
      %459 = vst [vmem:[#allocation11 + $0x18] sm:$0xff] %v455
    $region49: #{tpu_custom_call.1} parent=1 // pred_fallthru
      _
    // Predicated region
    $region50: #{tpu_custom_call.1} parent=1 // pred_check
      _
    $region51: #{tpu_custom_call.1} parent=1 // pred_check_branch
      %461 = sbr.rel (0) target = $region53
    $region52: #{tpu_custom_call.1} parent=1 // pred_region
      %s463 = ssub.s32 512, 512
      %464 = vsyncadd [#allocation5], %s463
      %s465 = sshll.u32 [#allocation11], 4
      %s466 = int_to_ptr.vmem [resolvable:$true] %s465
      %471 = dma.vmem_to_hbm [thread:$0]  %s466, 512, %s6, [#allocation5], 256, 256, 16
    $region53: #{tpu_custom_call.1} parent=1 // pred_fallthru
      _
    // Predicated region
    $region54: #{tpu_custom_call.1} parent=1 // pred_check
      _
    $region55: #{tpu_custom_call.1} parent=1 // pred_check_branch
      %473 = sbr.rel (0) target = $region57
    $region56: #{tpu_custom_call.1} parent=1 // pred_region
      %474 = dma.done [#allocation5], 512
    $region57: #{tpu_custom_call.1} parent=1 // pred_fallthru
      _
    %475 = vsyncpa [#allocation4], 1
    %476 = vsyncpa [#allocation7], 1
    %477 = vsyncpa [#allocation10], 1
    %478 = vsyncpa [#allocation5], 1

</llo_original>
